<compile_context>
chip_gen: v7x
topology: tpu7x:2x2x1
jax: 0.10.0
libtpu: 0.0.40
codegen_flags: <defaults>
</compile_context>

<pallas_src>
import functools

import jax
import jax.numpy as jnp
from jax.experimental import pallas as pl
from jax.experimental.pallas import tpu as pltpu

D_IN = 3        # Linear in_features  (torch.nn.Linear(3, 4))
D_OUT = 4       # Linear out_features
MASK_DIAG = 23  # torch loop: for i in range(23): attn_mask[:, :, i, i] = -inf


def attn_kernel(qkv_ref, w_ref, b_ref, o_ref, *, BH, Sq, Sk):
    # qkv_ref: (BH*Sq + 2*BH*Sk, D_IN)  -- q rows, then k rows, then v rows
    # w_ref:   (D_IN, D_OUT)            -- already transposed vs torch (out,in)
    # b_ref:   (1, D_OUT)
    # o_ref:   (BH, Sq, D_OUT)
    x = qkv_ref[...]
    w = w_ref[...]
    b = b_ref[...]

    # One fused projection for all of q, k and v (single MXU call + one
    # broadcast bias add instead of 3 per head).
    proj = jnp.dot(x, w, preferred_element_type=jnp.float32) + b   # (n_rows, D_OUT)

    nq = BH * Sq
    nk = BH * Sk
    # Sublane-aligned static slices (all offsets are multiples of 8).
    qp = proj[:nq].reshape(BH, Sq, D_OUT) * 0.5
    kp = proj[nq:nq + nk].reshape(BH, Sk, D_OUT) * 0.5
    vp = proj[nq + nk:nq + 2 * nk].reshape(BH, Sk, D_OUT)

    # Batched q @ k^T; contraction on the last dims (no materialized kp.T).
    scores = jnp.einsum("bqd,bkd->bqk", qp, kp,
                        preferred_element_type=jnp.float32)        # (BH, Sq, Sk)

    # Mask: the torch mask adds +1 to every finite entry of a row, which
    # cancels in softmax, so only the -inf diagonal entries matter.
    row = jax.lax.broadcasted_iota(jnp.int32, (BH, Sq, Sk), 1)
    col = jax.lax.broadcasted_iota(jnp.int32, (BH, Sq, Sk), 2)
    s = jnp.where((row == col) & (row < MASK_DIAG),
                  jnp.float32(-jnp.inf), scores)

    # Numerically stable softmax; normalization via the EUP approx reciprocal.
    m = jnp.max(s, axis=-1, keepdims=True)
    e = jnp.exp(s - m)
    denom = jnp.sum(e, axis=-1, keepdims=True)
    p = e * pl.reciprocal(denom, approx=True)

    o_ref[...] = jnp.einsum("bqk,bkd->bqd", p, vp,
                            preferred_element_type=jnp.float32)    # (BH, Sq, D_OUT)


def model_forward(q, k, v, w, bias):
    """q: (B,H,Sq,D_IN), k/v: (B,H,Sk,D_IN), w: (D_IN,D_OUT), bias: (D_OUT,)."""
    B, H, Sq, _ = q.shape
    Sk = k.shape[2]
    BH = B * H

    # Layout plumbing in the wrapper: stack all projection inputs row-wise so
    # the kernel can do a single fused matmul.
    qf = q.reshape(BH * Sq, D_IN)
    kf = k.reshape(BH * Sk, D_IN)
    vf = v.reshape(BH * Sk, D_IN)
    qkv = jnp.concatenate([qf, kf, vf], axis=0)        # (BH*Sq + 2*BH*Sk, D_IN)
    b2 = bias.reshape(1, D_OUT)
    n_rows = qkv.shape[0]

    kernel = functools.partial(attn_kernel, BH=BH, Sq=Sq, Sk=Sk)

    out = pl.pallas_call(
        kernel,
        out_shape=jax.ShapeDtypeStruct((BH, Sq, D_OUT), jnp.float32),
        grid=(1,),   # single step: whole problem (a few KB) lives in one VMEM tile
        in_specs=[
            pl.BlockSpec((n_rows, D_IN), lambda i: (0, 0)),
            pl.BlockSpec((D_IN, D_OUT), lambda i: (0, 0)),
            pl.BlockSpec((1, D_OUT), lambda i: (0, 0)),
        ],
        out_specs=pl.BlockSpec((BH, Sq, D_OUT), lambda i: (0, 0, 0)),
        compiler_params=pltpu.CompilerParams(
            dimension_semantics=("arbitrary",)),
    )(qkv, w, b2)
    return out.reshape(B, H, Sq, D_OUT)


def reference_forward(q, k, v, w, bias):
    # Pure-JAX reference mirroring the torch semantics exactly (incl. the +1).
    qp = (q @ w + bias) * 0.5
    kp = (k @ w + bias) * 0.5
    vp = v @ w + bias
    scores = jnp.einsum("bhqd,bhkd->bhqk", qp, kp)
    sq, sk = scores.shape[-2], scores.shape[-1]
    row = jax.lax.broadcasted_iota(jnp.int32, (sq, sk), 0)
    col = jax.lax.broadcasted_iota(jnp.int32, (sq, sk), 1)
    mask = jnp.where((row == col) & (row < MASK_DIAG), -jnp.inf, 1.0)
    s = scores + mask
    p = jax.nn.softmax(s, axis=-1)
    return jnp.einsum("bhqk,bhkd->bhqd", p, vp)


if __name__ == "__main__":
    B, H, Sq, Sk = 2, 2, 24, 24  # Sq, Sk >= 23 as implied by the diagonal-mask loop

    key = jax.random.PRNGKey(0)
    kq, kk, kv, kw, kb = jax.random.split(key, 5)

    q = jax.random.normal(kq, (B, H, Sq, D_IN), dtype=jnp.float32)
    k = jax.random.normal(kk, (B, H, Sk, D_IN), dtype=jnp.float32)
    v = jax.random.normal(kv, (B, H, Sk, D_IN), dtype=jnp.float32)

    # Deterministic Linear(3, 4) parameters (torch-style uniform(-1/sqrt(in), ...)),
    # stored already transposed so that y = x @ w + bias.
    bound = 1.0 / (D_IN ** 0.5)
    w = jax.random.uniform(kw, (D_IN, D_OUT), minval=-bound, maxval=bound,
                           dtype=jnp.float32)
    bias = jax.random.uniform(kb, (D_OUT,), minval=-bound, maxval=bound,
                              dtype=jnp.float32)

    out = model_forward(q, k, v, w, bias)
    jax.block_until_ready(out)

    ref = reference_forward(q, k, v, w, bias)
    assert out.shape == (B, H, Sq, D_OUT)
    # Tolerance accounts for the EUP approximate reciprocal in the softmax
    # normalization (relative error ~1e-4); real bugs produce O(0.1) errors.
    max_err = float(jnp.max(jnp.abs(out - ref)))
    assert jnp.allclose(out, ref, atol=2e-3, rtol=2e-3), (
        f"mismatch vs reference (max abs err={max_err})")

    print("KERNEL_OK")
</pallas_src>

<mosaic_0001>
module attributes {stable_mosaic.version = 11 : i64} {
  func.func @attn_kernel(%arg0: i32, %arg1: memref<288x3xf32, #tpu.memory_space<vmem>>, %arg2: memref<3x4xf32, #tpu.memory_space<vmem>>, %arg3: memref<1x4xf32, #tpu.memory_space<vmem>>, %arg4: memref<4x24x4xf32, #tpu.memory_space<vmem>>) attributes {dimension_semantics = [#tpu.dimension_semantics<arbitrary>], iteration_bounds = array<i64: 1>, scalar_prefetch = 0 : i64, scratch_operands = 0 : i64, tpu.core_type = #tpu.core_type<tc>, window_params = [{pipeline_mode = #tpu.pipeline_mode<synchronous>, transform_indices = @transform_0, window_bounds = array<i64: 288, 3>}, {pipeline_mode = #tpu.pipeline_mode<synchronous>, transform_indices = @transform_1, window_bounds = array<i64: 3, 4>}, {pipeline_mode = #tpu.pipeline_mode<synchronous>, transform_indices = @transform_2, window_bounds = array<i64: 1, 4>}, {pipeline_mode = #tpu.pipeline_mode<synchronous>, transform_indices = @transform_3, window_bounds = array<i64: 4, 24, 4>}]} {
    %c0 = arith.constant 0 : index
    %c0_0 = arith.constant 0 : index
    %0 = vector.load %arg1[%c0, %c0_0] : memref<288x3xf32, #tpu.memory_space<vmem>>, vector<288x3xf32>
    %c0_1 = arith.constant 0 : index
    %c0_2 = arith.constant 0 : index
    %1 = vector.load %arg2[%c0_1, %c0_2] : memref<3x4xf32, #tpu.memory_space<vmem>>, vector<3x4xf32>
    %c0_3 = arith.constant 0 : index
    %c0_4 = arith.constant 0 : index
    %2 = vector.load %arg3[%c0_3, %c0_4] : memref<1x4xf32, #tpu.memory_space<vmem>>, vector<1x4xf32>
    %cst = arith.constant dense<0.000000e+00> : vector<288x4xf32>
    %3 = tpu.matmul %0, %1, %cst {dimension_numbers = #tpu.dot_dimension_numbers<[1], [0], [0], [1], [0, 0, 1, 1], [], []>} : vector<288x3xf32>, vector<3x4xf32>, vector<288x4xf32> -> vector<288x4xf32>
    %4 = vector.broadcast %2 : vector<1x4xf32> to vector<288x4xf32>
    %5 = arith.addf %3, %4 : vector<288x4xf32>
    %6 = vector.extract_strided_slice %5 {offsets = [0, 0], sizes = [96, 4], strides = [1, 1]} : vector<288x4xf32> to vector<96x4xf32>
    %7 = vector.shape_cast %6 : vector<96x4xf32> to vector<4x24x4xf32>
    %cst_5 = arith.constant 5.000000e-01 : f32
    %8 = vector.broadcast %cst_5 : f32 to vector<4x24x4xf32>
    %9 = arith.mulf %7, %8 : vector<4x24x4xf32>
    %10 = vector.extract_strided_slice %5 {offsets = [96, 0], sizes = [96, 4], strides = [1, 1]} : vector<288x4xf32> to vector<96x4xf32>
    %11 = vector.shape_cast %10 : vector<96x4xf32> to vector<4x24x4xf32>
    %cst_6 = arith.constant 5.000000e-01 : f32
    %12 = vector.broadcast %cst_6 : f32 to vector<4x24x4xf32>
    %13 = arith.mulf %11, %12 : vector<4x24x4xf32>
    %14 = vector.extract_strided_slice %5 {offsets = [192, 0], sizes = [96, 4], strides = [1, 1]} : vector<288x4xf32> to vector<96x4xf32>
    %15 = vector.shape_cast %14 : vector<96x4xf32> to vector<4x24x4xf32>
    "tpu.trace_start"() <{level = 10 : i32, message = "bqd,bkd->bqk"}> : () -> ()
    %cst_7 = arith.constant dense<0.000000e+00> : vector<4x24x24xf32>
    %16 = tpu.matmul %9, %13, %cst_7 {dimension_numbers = #tpu.dot_dimension_numbers<[2], [2], [1], [1], [0, 0, 0, 1, 1, 1], [0], [0]>} : vector<4x24x4xf32>, vector<4x24x4xf32>, vector<4x24x24xf32> -> vector<4x24x24xf32>
    "tpu.trace_stop"() : () -> ()
    %17 = tpu.iota {dimensions = array<i32: 1>} : vector<4x24x24xi32>
    %18 = tpu.iota {dimensions = array<i32: 2>} : vector<4x24x24xi32>
    %19 = arith.cmpi eq, %17, %18 : vector<4x24x24xi32>
    %c23_i32 = arith.constant 23 : i32
    %20 = vector.broadcast %c23_i32 : i32 to vector<4x24x24xi32>
    %21 = arith.cmpi slt, %17, %20 : vector<4x24x24xi32>
    %22 = arith.andi %19, %21 : vector<4x24x24xi1>
    %cst_8 = arith.constant 0xFF800000 : f32
    %23 = vector.broadcast %cst_8 : f32 to vector<4x24x24xf32>
    %24 = arith.select %22, %23, %16 : vector<4x24x24xi1>, vector<4x24x24xf32>
    %cst_9 = arith.constant dense<0xFF800000> : vector<4x24xf32>
    %25 = vector.multi_reduction <maximumf>, %24, %cst_9 [2] : vector<4x24x24xf32> to vector<4x24xf32>
    %26 = vector.shape_cast %25 : vector<4x24xf32> to vector<4x24x1xf32>
    %27 = vector.broadcast %26 : vector<4x24x1xf32> to vector<4x24x24xf32>
    %28 = arith.subf %24, %27 : vector<4x24x24xf32>
    %29 = math.exp %28 : vector<4x24x24xf32>
    %cst_10 = arith.constant dense<0.000000e+00> : vector<4x24xf32>
    %30 = vector.multi_reduction <add>, %29, %cst_10 [2] : vector<4x24x24xf32> to vector<4x24xf32>
    %31 = vector.shape_cast %30 : vector<4x24xf32> to vector<4x24x1xf32>
    %32 = tpu.reciprocal %31 {approx = true} : vector<4x24x1xf32> -> vector<4x24x1xf32>
    %33 = vector.broadcast %32 : vector<4x24x1xf32> to vector<4x24x24xf32>
    %34 = arith.mulf %29, %33 : vector<4x24x24xf32>
    "tpu.trace_start"() <{level = 10 : i32, message = "bqk,bkd->bqd"}> : () -> ()
    %cst_11 = arith.constant dense<0.000000e+00> : vector<4x24x4xf32>
    %35 = tpu.matmul %34, %15, %cst_11 {dimension_numbers = #tpu.dot_dimension_numbers<[2], [1], [1], [2], [0, 0, 0, 1, 1, 2], [0], [0]>} : vector<4x24x24xf32>, vector<4x24x4xf32>, vector<4x24x4xf32> -> vector<4x24x4xf32>
    "tpu.trace_stop"() : () -> ()
    %c0_12 = arith.constant 0 : index
    %c0_13 = arith.constant 0 : index
    %c0_14 = arith.constant 0 : index
    %36 = vector.load %arg4[%c0_12, %c0_13, %c0_14] : memref<4x24x4xf32, #tpu.memory_space<vmem>>, vector<4x24x4xf32>
    tpu.vector_store %arg4[%c0_12, %c0_13, %c0_14], %35 {strides = array<i32>} : memref<4x24x4xf32, #tpu.memory_space<vmem>>, vector<4x24x4xf32>,
    return
  }
  func.func @transform_0(%arg0: i32) -> (i32, i32) {
    %c0_i32 = arith.constant 0 : i32
    %c0_i32_0 = arith.constant 0 : i32
    %c0_i32_1 = arith.constant 0 : i32
    return %c0_i32, %c0_i32_0 : i32, i32
  }
  func.func @transform_1(%arg0: i32) -> (i32, i32) {
    %c0_i32 = arith.constant 0 : i32
    %c0_i32_0 = arith.constant 0 : i32
    %c0_i32_1 = arith.constant 0 : i32
    return %c0_i32, %c0_i32_0 : i32, i32
  }
  func.func @transform_2(%arg0: i32) -> (i32, i32) {
    %c0_i32 = arith.constant 0 : i32
    %c0_i32_0 = arith.constant 0 : i32
    %c0_i32_1 = arith.constant 0 : i32
    return %c0_i32, %c0_i32_0 : i32, i32
  }
  func.func @transform_3(%arg0: i32) -> (i32, i32, i32) {
    %c0_i32 = arith.constant 0 : i32
    %c0_i32_0 = arith.constant 0 : i32
    %c0_i32_1 = arith.constant 0 : i32
    %c0_i32_2 = arith.constant 0 : i32
    return %c0_i32, %c0_i32_0, %c0_i32_1 : i32, i32, i32
  }
}

</mosaic_0001>

<llo_original>
// kernel: tpu_custom_call.1
$region0: #{tpu_custom_call.1}
  #allocation0 [shape = 'u32[]', space=smem, size = 0x4, offset = 0x4, fixed_abs, tag = 'smem constant byte address 0x4 - core index']
  #allocation1 [shape = 'u32[144,128]{1,0:T(1,128)}', space=vmem, size = 0x12000, scoped, tag = 'internal scratch']
  %s0 = inlined_call_operand.vmem [shape: f32[288,3], index: 0, kind: input, shape index: {}]
  %s1 = inlined_call_operand.vmem [shape: f32[3,4], index: 1, kind: input, shape index: {}]
  %s2 = inlined_call_operand.vmem [shape: f32[1,4], index: 2, kind: input, shape index: {}]
  %s3 = inlined_call_operand.vmem [shape: f32[4,24,4], index: 3, kind: output, shape index: {}]
  %s4 = sld [smem:[#allocation0]]
  $region22: #{tpu_custom_call.1} parent=0
    _
  %s6 = ssub.s32 1, %s4
  %s7 = scalar_select 0, %s6, %s4
  // Predicated region
  $region2: #{tpu_custom_call.1} parent=0 // pred_check
    _
  $region3: #{tpu_custom_call.1} parent=0 // pred_check_branch
    %9 = sbr.rel (0) target = $region5
  $region4: #{tpu_custom_call.1} parent=0 // pred_region
    _
  $region5: #{tpu_custom_call.1} parent=0 // pred_fallthru
    _
  // Predicated region
  $region6: #{tpu_custom_call.1} parent=0 // pred_check
    _
  $region7: #{tpu_custom_call.1} parent=0 // pred_check_branch
    %11 = sbr.rel (0) target = $region9
  $region8: #{tpu_custom_call.1} parent=0 // pred_region
    _
  $region9: #{tpu_custom_call.1} parent=0 // pred_fallthru
    _
  // Predicated region
  $region10: #{tpu_custom_call.1} parent=0 // pred_check
    _
  $region11: #{tpu_custom_call.1} parent=0 // pred_check_branch
    %13 = sbr.rel (0) target = $region13
  $region12: #{tpu_custom_call.1} parent=0 // pred_region
    _
  $region13: #{tpu_custom_call.1} parent=0 // pred_fallthru
    _
  %v14 = vld [vmem:[%s0] sm:$0xff]
  %v15 = vld [vmem:[%s0 + $0x8] sm:$0xff]
  %v16 = vld [vmem:[%s0 + $0x10] sm:$0xff]
  %v17 = vld [vmem:[%s0 + $0x18] sm:$0xff]
  %v18 = vld [vmem:[%s0 + $0x20] sm:$0xff]
  %v19 = vld [vmem:[%s0 + $0x28] sm:$0xff]
  %v20 = vld [vmem:[%s0 + $0x30] sm:$0xff]
  %v21 = vld [vmem:[%s0 + $0x38] sm:$0xff]
  %v22 = vld [vmem:[%s0 + $0x40] sm:$0xff]
  %v23 = vld [vmem:[%s0 + $0x48] sm:$0xff]
  %v24 = vld [vmem:[%s0 + $0x50] sm:$0xff]
  %v25 = vld [vmem:[%s0 + $0x58] sm:$0xff]
  %v26 = vld [vmem:[%s0 + $0x60] sm:$0xff]
  %v27 = vld [vmem:[%s0 + $0x68] sm:$0xff]
  %v28 = vld [vmem:[%s0 + $0x70] sm:$0xff]
  %v29 = vld [vmem:[%s0 + $0x78] sm:$0xff]
  %v30 = vld [vmem:[%s0 + $0x80] sm:$0xff]
  %v31 = vld [vmem:[%s0 + $0x88] sm:$0xff]
  %v32 = vld [vmem:[%s0 + $0x90] sm:$0xff]
  %v33 = vld [vmem:[%s0 + $0x98] sm:$0xff]
  %v34 = vld [vmem:[%s0 + $0xa0] sm:$0xff]
  %v35 = vld [vmem:[%s0 + $0xa8] sm:$0xff]
  %v36 = vld [vmem:[%s0 + $0xb0] sm:$0xff]
  %v37 = vld [vmem:[%s0 + $0xb8] sm:$0xff]
  %v38 = vld [vmem:[%s0 + $0xc0] sm:$0xff]
  %v39 = vld [vmem:[%s0 + $0xc8] sm:$0xff]
  %v40 = vld [vmem:[%s0 + $0xd0] sm:$0xff]
  %v41 = vld [vmem:[%s0 + $0xd8] sm:$0xff]
  %v42 = vld [vmem:[%s0 + $0xe0] sm:$0xff]
  %v43 = vld [vmem:[%s0 + $0xe8] sm:$0xff]
  %v44 = vld [vmem:[%s0 + $0xf0] sm:$0xff]
  %v45 = vld [vmem:[%s0 + $0xf8] sm:$0xff]
  %v46 = vld [vmem:[%s0 + $0x100] sm:$0xff]
  %v47 = vld [vmem:[%s0 + $0x108] sm:$0xff]
  %v48 = vld [vmem:[%s0 + $0x110] sm:$0xff]
  %v49 = vld [vmem:[%s0 + $0x118] sm:$0xff]
  %v50 = vld [vmem:[%s1] sm:$0x7]
  %v51 = vld [vmem:[%s2] sm:$0x1]
  %v53 = vlaneseq
  %v54 = vshrl.u32 %v53, 7
  %v55 = vsub.s32 0, %v54
  %v56 = vrot.slane %v51, %v55
  %vm58 = vcmask 23552
  %v60 = vsel %vm58, %v14, 0
  %v63 = vsel %vm58, %v15, 0
  %v66 = vsel %vm58, %v16, 0
  %v69 = vsel %vm58, %v17, 0
  %v72 = vsel %vm58, %v18, 0
  %v75 = vsel %vm58, %v19, 0
  %v78 = vsel %vm58, %v20, 0
  %v81 = vsel %vm58, %v21, 0
  %v84 = vsel %vm58, %v22, 0
  %v87 = vsel %vm58, %v23, 0
  %v90 = vsel %vm58, %v24, 0
  %v93 = vsel %vm58, %v25, 0
  %v96 = vsel %vm58, %v26, 0
  %v99 = vsel %vm58, %v27, 0
  %v102 = vsel %vm58, %v28, 0
  %v105 = vsel %vm58, %v29, 0
  %v108 = vsel %vm58, %v30, 0
  %v111 = vsel %vm58, %v31, 0
  %v114 = vsel %vm58, %v32, 0
  %v117 = vsel %vm58, %v33, 0
  %v120 = vsel %vm58, %v34, 0
  %v123 = vsel %vm58, %v35, 0
  %v126 = vsel %vm58, %v36, 0
  %v129 = vsel %vm58, %v37, 0
  %v132 = vsel %vm58, %v38, 0
  %v135 = vsel %vm58, %v39, 0
  %v138 = vsel %vm58, %v40, 0
  %v141 = vsel %vm58, %v41, 0
  %v144 = vsel %vm58, %v42, 0
  %v147 = vsel %vm58, %v43, 0
  %v150 = vsel %vm58, %v44, 0
  %v153 = vsel %vm58, %v45, 0
  %v156 = vsel %vm58, %v46, 0
  %v159 = vsel %vm58, %v47, 0
  %v162 = vsel %vm58, %v48, 0
  %v165 = vsel %vm58, %v49, 0
  %vm167 = vcmask 1042432
  %v169 = vsel %vm167, %v50, 0
  %171 = vmatprep.subr.mxu0 0.0
  %172 = vmatpush1.msra.mxu0 %v169
  %173 = vmatprep.subr.mxu0 0.0
  %174 = vmatpush1.msra.mxu0 0.0
  %175 = vmatprep.subr.mxu0 0.0
  %176 = vmatpush1.msra.mxu0 0.0
  %177 = vmatprep.subr.mxu0 0.0
  %178 = vmatpush1.msra.mxu0 0.0
  %179 = vmatprep.subr.mxu0 0.0
  %180 = vmatpush1.msra.mxu0 0.0
  %181 = vmatprep.subr.mxu0 0.0
  %182 = vmatpush1.msra.mxu0 0.0
  %183 = vmatprep.subr.mxu0 0.0
  %184 = vmatpush1.msra.mxu0 0.0
  %185 = vmatprep.subr.mxu0 0.0
  %186 = vmatpush1.msra.mxu0 0.0
  %187 = vmatprep.subr.mxu0 0.0
  %188 = vmatpush1.msra.mxu0 0.0
  %189 = vmatprep.subr.mxu0 0.0
  %190 = vmatpush1.msra.mxu0 0.0
  %191 = vmatprep.subr.mxu0 0.0
  %192 = vmatpush1.msra.mxu0 0.0
  %193 = vmatprep.subr.mxu0 0.0
  %194 = vmatpush1.msra.mxu0 0.0
  %195 = vmatprep.subr.mxu0 0.0
  %196 = vmatpush1.msra.mxu0 0.0
  %197 = vmatprep.subr.mxu0 0.0
  %198 = vmatpush1.msra.mxu0 0.0
  %199 = vmatprep.subr.mxu0 0.0
  %200 = vmatpush1.msra.mxu0 0.0
  %201 = vmatprep.subr.mxu0 0.0
  %202 = vmatpush1.msra.mxu0 0.0
  %203 = vmatprep.subr.mxu0 0.0
  %204 = vmatpush1.msra.mxu0 0.0
  %205 = vmatprep.subr.mxu0 0.0
  %206 = vmatpush1.msra.mxu0 0.0
  %207 = vmatprep.subr.mxu0 0.0
  %208 = vmatpush1.msra.mxu0 0.0
  %209 = vmatprep.subr.mxu0 0.0
  %210 = vmatpush1.msra.mxu0 0.0
  %211 = vmatprep.subr.mxu0 0.0
  %212 = vmatpush1.msra.mxu0 0.0
  %213 = vmatprep.subr.mxu0 0.0
  %214 = vmatpush1.msra.mxu0 0.0
  %215 = vmatprep.subr.mxu0 0.0
  %216 = vmatpush1.msra.mxu0 0.0
  %217 = vmatprep.subr.mxu0 0.0
  %218 = vmatpush1.msra.mxu0 0.0
  %219 = vmatprep.subr.mxu0 0.0
  %220 = vmatpush1.msra.mxu0 0.0
  %221 = vmatprep.subr.mxu0 0.0
  %222 = vmatpush1.msra.mxu0 0.0
  %223 = vmatprep.subr.mxu0 0.0
  %224 = vmatpush1.msra.mxu0 0.0
  %225 = vmatprep.subr.mxu0 0.0
  %226 = vmatpush1.msra.mxu0 0.0
  %227 = vmatprep.subr.mxu0 0.0
  %228 = vmatpush1.msra.mxu0 0.0
  %229 = vmatprep.subr.mxu0 0.0
  %230 = vmatpush1.msra.mxu0 0.0
  %231 = vmatprep.subr.mxu0 0.0
  %232 = vmatpush1.msra.mxu0 0.0
  %233 = vmatprep.subr.mxu0 0.0
  %234 = vmatpush1.msra.mxu0 0.0
  %235 = vmatprep.mubr.f32.mxu0 0.0
  %236 = vmatmul.mubr.f32.gmra.mrb[0].mxu0 %v60
  %v237 = vpop.f32.mrb[0].mxu0
  %v238 = vadd.f32 %v56, %v237
  %v239 = vpop.f32.mrb[0].mxu0
  %240 = vmatprep.mubr.f32.mxu0 0.0
  %241 = vmatmul.mubr.f32.gmra.mrb[0].mxu0 %v63
  %v242 = vpop.f32.mrb[0].mxu0
  %v243 = vadd.f32 %v56, %v242
  %v244 = vpop.f32.mrb[0].mxu0
  %245 = vmatprep.mubr.f32.mxu0 0.0
  %246 = vmatmul.mubr.f32.gmra.mrb[0].mxu0 %v66
  %v247 = vpop.f32.mrb[0].mxu0
  %v248 = vadd.f32 %v56, %v247
  %v249 = vpop.f32.mrb[0].mxu0
  %250 = vmatprep.mubr.f32.mxu0 0.0
  %251 = vmatmul.mubr.f32.gmra.mrb[0].mxu0 %v69
  %v252 = vpop.f32.mrb[0].mxu0
  %v253 = vadd.f32 %v56, %v252
  %v254 = vpop.f32.mrb[0].mxu0
  %255 = vmatprep.mubr.f32.mxu0 0.0
  %256 = vmatmul.mubr.f32.gmra.mrb[0].mxu0 %v72
  %v257 = vpop.f32.mrb[0].mxu0
  %v258 = vadd.f32 %v56, %v257
  %v259 = vpop.f32.mrb[0].mxu0
  %260 = vmatprep.mubr.f32.mxu0 0.0
  %261 = vmatmul.mubr.f32.gmra.mrb[0].mxu0 %v75
  %v262 = vpop.f32.mrb[0].mxu0
  %v263 = vadd.f32 %v56, %v262
  %v264 = vpop.f32.mrb[0].mxu0
  %265 = vmatprep.mubr.f32.mxu0 0.0
  %266 = vmatmul.mubr.f32.gmra.mrb[0].mxu0 %v78
  %v267 = vpop.f32.mrb[0].mxu0
  %v268 = vadd.f32 %v56, %v267
  %v269 = vpop.f32.mrb[0].mxu0
  %270 = vmatprep.mubr.f32.mxu0 0.0
  %271 = vmatmul.mubr.f32.gmra.mrb[0].mxu0 %v81
  %v272 = vpop.f32.mrb[0].mxu0
  %v273 = vadd.f32 %v56, %v272
  %v274 = vpop.f32.mrb[0].mxu0
  %275 = vmatprep.mubr.f32.mxu0 0.0
  %276 = vmatmul.mubr.f32.gmra.mrb[0].mxu0 %v84
  %v277 = vpop.f32.mrb[0].mxu0
  %v278 = vadd.f32 %v56, %v277
  %v279 = vpop.f32.mrb[0].mxu0
  %280 = vmatprep.mubr.f32.mxu0 0.0
  %281 = vmatmul.mubr.f32.gmra.mrb[0].mxu0 %v87
  %v282 = vpop.f32.mrb[0].mxu0
  %v283 = vadd.f32 %v56, %v282
  %v284 = vpop.f32.mrb[0].mxu0
  %285 = vmatprep.mubr.f32.mxu0 0.0
  %286 = vmatmul.mubr.f32.gmra.mrb[0].mxu0 %v90
  %v287 = vpop.f32.mrb[0].mxu0
  %v288 = vadd.f32 %v56, %v287
  %v289 = vpop.f32.mrb[0].mxu0
  %290 = vmatprep.mubr.f32.mxu0 0.0
  %291 = vmatmul.mubr.f32.gmra.mrb[0].mxu0 %v93
  %v292 = vpop.f32.mrb[0].mxu0
  %v293 = vadd.f32 %v56, %v292
  %v294 = vpop.f32.mrb[0].mxu0
  %295 = vmatprep.mubr.f32.mxu0 0.0
  %296 = vmatmul.mubr.f32.gmra.mrb[0].mxu0 %v96
  %v297 = vpop.f32.mrb[0].mxu0
  %v298 = vadd.f32 %v56, %v297
  %v299 = vpop.f32.mrb[0].mxu0
  %300 = vmatprep.mubr.f32.mxu0 0.0
  %301 = vmatmul.mubr.f32.gmra.mrb[0].mxu0 %v99
  %v302 = vpop.f32.mrb[0].mxu0
  %v303 = vadd.f32 %v56, %v302
  %v304 = vpop.f32.mrb[0].mxu0
  %305 = vmatprep.mubr.f32.mxu0 0.0
  %306 = vmatmul.mubr.f32.gmra.mrb[0].mxu0 %v102
  %v307 = vpop.f32.mrb[0].mxu0
  %v308 = vadd.f32 %v56, %v307
  %v309 = vpop.f32.mrb[0].mxu0
  %310 = vmatprep.mubr.f32.mxu0 0.0
  %311 = vmatmul.mubr.f32.gmra.mrb[0].mxu0 %v105
  %v312 = vpop.f32.mrb[0].mxu0
  %v313 = vadd.f32 %v56, %v312
  %v314 = vpop.f32.mrb[0].mxu0
  %315 = vmatprep.mubr.f32.mxu0 0.0
  %316 = vmatmul.mubr.f32.gmra.mrb[0].mxu0 %v108
  %v317 = vpop.f32.mrb[0].mxu0
  %v318 = vadd.f32 %v56, %v317
  %v319 = vpop.f32.mrb[0].mxu0
  %320 = vmatprep.mubr.f32.mxu0 0.0
  %321 = vmatmul.mubr.f32.gmra.mrb[0].mxu0 %v111
  %v322 = vpop.f32.mrb[0].mxu0
  %v323 = vadd.f32 %v56, %v322
  %v324 = vpop.f32.mrb[0].mxu0
  %325 = vmatprep.mubr.f32.mxu0 0.0
  %326 = vmatmul.mubr.f32.gmra.mrb[0].mxu0 %v114
  %v327 = vpop.f32.mrb[0].mxu0
  %v328 = vadd.f32 %v56, %v327
  %v329 = vpop.f32.mrb[0].mxu0
  %330 = vmatprep.mubr.f32.mxu0 0.0
  %331 = vmatmul.mubr.f32.gmra.mrb[0].mxu0 %v117
  %v332 = vpop.f32.mrb[0].mxu0
  %v333 = vadd.f32 %v56, %v332
  %v334 = vpop.f32.mrb[0].mxu0
  %335 = vmatprep.mubr.f32.mxu0 0.0
  %336 = vmatmul.mubr.f32.gmra.mrb[0].mxu0 %v120
  %v337 = vpop.f32.mrb[0].mxu0
  %v338 = vadd.f32 %v56, %v337
  %v339 = vpop.f32.mrb[0].mxu0
  %340 = vmatprep.mubr.f32.mxu0 0.0
  %341 = vmatmul.mubr.f32.gmra.mrb[0].mxu0 %v123
  %v342 = vpop.f32.mrb[0].mxu0
  %v343 = vadd.f32 %v56, %v342
  %v344 = vpop.f32.mrb[0].mxu0
  %345 = vmatprep.mubr.f32.mxu0 0.0
  %346 = vmatmul.mubr.f32.gmra.mrb[0].mxu0 %v126
  %v347 = vpop.f32.mrb[0].mxu0
  %v348 = vadd.f32 %v56, %v347
  %v349 = vpop.f32.mrb[0].mxu0
  %350 = vmatprep.mubr.f32.mxu0 0.0
  %351 = vmatmul.mubr.f32.gmra.mrb[0].mxu0 %v129
  %v352 = vpop.f32.mrb[0].mxu0
  %v353 = vadd.f32 %v56, %v352
  %v354 = vpop.f32.mrb[0].mxu0
  %355 = vmatprep.mubr.f32.mxu0 0.0
  %356 = vmatmul.mubr.f32.gmra.mrb[0].mxu0 %v132
  %v357 = vpop.f32.mrb[0].mxu0
  %v358 = vadd.f32 %v56, %v357
  %v359 = vpop.f32.mrb[0].mxu0
  %360 = vmatprep.mubr.f32.mxu0 0.0
  %361 = vmatmul.mubr.f32.gmra.mrb[0].mxu0 %v135
  %v362 = vpop.f32.mrb[0].mxu0
  %v363 = vadd.f32 %v56, %v362
  %v364 = vpop.f32.mrb[0].mxu0
  %365 = vmatprep.mubr.f32.mxu0 0.0
  %366 = vmatmul.mubr.f32.gmra.mrb[0].mxu0 %v138
  %v367 = vpop.f32.mrb[0].mxu0
  %v368 = vadd.f32 %v56, %v367
  %v369 = vpop.f32.mrb[0].mxu0
  %370 = vmatprep.mubr.f32.mxu0 0.0
  %371 = vmatmul.mubr.f32.gmra.mrb[0].mxu0 %v141
  %v372 = vpop.f32.mrb[0].mxu0
  %v373 = vadd.f32 %v56, %v372
  %v374 = vpop.f32.mrb[0].mxu0
  %375 = vmatprep.mubr.f32.mxu0 0.0
  %376 = vmatmul.mubr.f32.gmra.mrb[0].mxu0 %v144
  %v377 = vpop.f32.mrb[0].mxu0
  %v378 = vadd.f32 %v56, %v377
  %v379 = vpop.f32.mrb[0].mxu0
  %380 = vmatprep.mubr.f32.mxu0 0.0
  %381 = vmatmul.mubr.f32.gmra.mrb[0].mxu0 %v147
  %v382 = vpop.f32.mrb[0].mxu0
  %v383 = vadd.f32 %v56, %v382
  %v384 = vpop.f32.mrb[0].mxu0
  %385 = vmatprep.mubr.f32.mxu0 0.0
  %386 = vmatmul.mubr.f32.gmra.mrb[0].mxu0 %v150
  %v387 = vpop.f32.mrb[0].mxu0
  %v388 = vadd.f32 %v56, %v387
  %v389 = vpop.f32.mrb[0].mxu0
  %390 = vmatprep.mubr.f32.mxu0 0.0
  %391 = vmatmul.mubr.f32.gmra.mrb[0].mxu0 %v153
  %v392 = vpop.f32.mrb[0].mxu0
  %v393 = vadd.f32 %v56, %v392
  %v394 = vpop.f32.mrb[0].mxu0
  %395 = vmatprep.mubr.f32.mxu0 0.0
  %396 = vmatmul.mubr.f32.gmra.mrb[0].mxu0 %v156
  %v397 = vpop.f32.mrb[0].mxu0
  %v398 = vadd.f32 %v56, %v397
  %v399 = vpop.f32.mrb[0].mxu0
  %400 = vmatprep.mubr.f32.mxu0 0.0
  %401 = vmatmul.mubr.f32.gmra.mrb[0].mxu0 %v159
  %v402 = vpop.f32.mrb[0].mxu0
  %v403 = vadd.f32 %v56, %v402
  %v404 = vpop.f32.mrb[0].mxu0
  %405 = vmatprep.mubr.f32.mxu0 0.0
  %406 = vmatmul.mubr.f32.gmra.mrb[0].mxu0 %v162
  %v407 = vpop.f32.mrb[0].mxu0
  %v408 = vadd.f32 %v56, %v407
  %v409 = vpop.f32.mrb[0].mxu0
  %410 = vmatprep.mubr.f32.mxu0 0.0
  %411 = vmatmul.mubr.f32.gmra.mrb[0].mxu0 %v165
  %v412 = vpop.f32.mrb[0].mxu0
  %v413 = vadd.f32 %v56, %v412
  %v414 = vpop.f32.mrb[0].mxu0
  %415 = vdwg.mxu0
  %v416 = vmul.f32 %v238, 0.5
  %v417 = vmul.f32 %v243, 0.5
  %v418 = vmul.f32 %v248, 0.5
  %v419 = vmul.f32 %v253, 0.5
  %v420 = vmul.f32 %v258, 0.5
  %v421 = vmul.f32 %v263, 0.5
  %v422 = vmul.f32 %v268, 0.5
  %v423 = vmul.f32 %v273, 0.5
  %v424 = vmul.f32 %v278, 0.5
  %v425 = vmul.f32 %v283, 0.5
  %v426 = vmul.f32 %v288, 0.5
  %v427 = vmul.f32 %v293, 0.5
  %v428 = vmul.f32 %v298, 0.5
  %v429 = vmul.f32 %v303, 0.5
  %v430 = vmul.f32 %v308, 0.5
  %v431 = vmul.f32 %v313, 0.5
  %v432 = vmul.f32 %v318, 0.5
  %v433 = vmul.f32 %v323, 0.5
  %v434 = vmul.f32 %v328, 0.5
  %v435 = vmul.f32 %v333, 0.5
  %v436 = vmul.f32 %v338, 0.5
  %v437 = vmul.f32 %v343, 0.5
  %v438 = vmul.f32 %v348, 0.5
  %v439 = vmul.f32 %v353, 0.5
  %vm440 = vcmask 31744
  %v442 = vsel %vm440, %v416, 0
  %v445 = vsel %vm440, %v417, 0
  %v448 = vsel %vm440, %v418, 0
  %v451 = vsel %vm440, %v428, 0
  %v454 = vsel %vm440, %v429, 0
  %v457 = vsel %vm440, %v430, 0
  %459 = vmatprep.subr.mxu0 0.0
  %460 = vmatpush1.xpose.msra.mxu0 %v451
  %461 = vmatprep.subr.mxu0 0.0
  %462 = vmatpush1.xpose.msra.mxu0 %v454
  %463 = vmatprep.subr.mxu0 0.0
  %464 = vmatpush1.xpose.msra.mxu0 %v457
  %465 = vmatprep.subr.mxu0 0.0
  %466 = vmatpush1.xpose.msra.mxu0 0.0
  %467 = vmatprep.subr.mxu0 0.0
  %468 = vmatpush1.xpose.msra.mxu0 0.0
  %469 = vmatprep.subr.mxu0 0.0
  %470 = vmatpush1.xpose.msra.mxu0 0.0
  %471 = vmatprep.subr.mxu0 0.0
  %472 = vmatpush1.xpose.msra.mxu0 0.0
  %473 = vmatprep.subr.mxu0 0.0
  %474 = vmatpush1.xpose.msra.mxu0 0.0
  %475 = vmatprep.subr.mxu0 0.0
  %476 = vmatpush1.xpose.msra.mxu0 0.0
  %477 = vmatprep.subr.mxu0 0.0
  %478 = vmatpush1.xpose.msra.mxu0 0.0
  %479 = vmatprep.subr.mxu0 0.0
  %480 = vmatpush1.xpose.msra.mxu0 0.0
  %481 = vmatprep.subr.mxu0 0.0
  %482 = vmatpush1.xpose.msra.mxu0 0.0
  %483 = vmatprep.subr.mxu0 0.0
  %484 = vmatpush1.xpose.msra.mxu0 0.0
  %485 = vmatprep.subr.mxu0 0.0
  %486 = vmatpush1.xpose.msra.mxu0 0.0
  %487 = vmatprep.subr.mxu0 0.0
  %488 = vmatpush1.xpose.msra.mxu0 0.0
  %489 = vmatprep.subr.mxu0 0.0
  %490 = vmatpush1.xpose.msra.mxu0 0.0
  %491 = vmatprep.subr.mxu0 0.0
  %492 = vmatpush1.xpose.msra.mxu0 0.0
  %493 = vmatprep.subr.mxu0 0.0
  %494 = vmatpush1.xpose.msra.mxu0 0.0
  %495 = vmatprep.subr.mxu0 0.0
  %496 = vmatpush1.xpose.msra.mxu0 0.0
  %497 = vmatprep.subr.mxu0 0.0
  %498 = vmatpush1.xpose.msra.mxu0 0.0
  %499 = vmatprep.subr.mxu0 0.0
  %500 = vmatpush1.xpose.msra.mxu0 0.0
  %501 = vmatprep.subr.mxu0 0.0
  %502 = vmatpush1.xpose.msra.mxu0 0.0
  %503 = vmatprep.subr.mxu0 0.0
  %504 = vmatpush1.xpose.msra.mxu0 0.0
  %505 = vmatprep.subr.mxu0 0.0
  %506 = vmatpush1.xpose.msra.mxu0 0.0
  %507 = vmatprep.subr.mxu0 0.0
  %508 = vmatpush1.xpose.msra.mxu0 0.0
  %509 = vmatprep.subr.mxu0 0.0
  %510 = vmatpush1.xpose.msra.mxu0 0.0
  %511 = vmatprep.subr.mxu0 0.0
  %512 = vmatpush1.xpose.msra.mxu0 0.0
  %513 = vmatprep.subr.mxu0 0.0
  %514 = vmatpush1.xpose.msra.mxu0 0.0
  %515 = vmatprep.subr.mxu0 0.0
  %516 = vmatpush1.xpose.msra.mxu0 0.0
  %517 = vmatprep.subr.mxu0 0.0
  %518 = vmatpush1.xpose.msra.mxu0 0.0
  %519 = vmatprep.subr.mxu0 0.0
  %520 = vmatpush1.xpose.msra.mxu0 0.0
  %521 = vmatprep.subr.mxu0 0.0
  %522 = vmatpush1.xpose.msra.mxu0 0.0
  %523 = vmatprep.mubr.f32.mxu0 0.0
  %524 = vmatmul.mubr.f32.gmra.mrb[0].mxu0 %v442
  %v525 = vpop.f32.mrb[0].mxu0
  %v526 = vadd.f32 0.0, %v525
  %v527 = vpop.f32.mrb[0].mxu0
  %528 = vmatprep.mubr.f32.mxu0 0.0
  %529 = vmatmul.mubr.f32.gmra.mrb[0].mxu0 %v445
  %v530 = vpop.f32.mrb[0].mxu0
  %v531 = vadd.f32 0.0, %v530
  %v532 = vpop.f32.mrb[0].mxu0
  %533 = vmatprep.mubr.f32.mxu0 0.0
  %534 = vmatmul.mubr.f32.gmra.mrb[0].mxu0 %v448
  %v535 = vpop.f32.mrb[0].mxu0
  %v536 = vadd.f32 0.0, %v535
  %v537 = vpop.f32.mrb[0].mxu0
  %538 = vdwg.mxu0
  %v540 = vsel %vm440, %v419, 0
  %v543 = vsel %vm440, %v420, 0
  %v546 = vsel %vm440, %v421, 0
  %v549 = vsel %vm440, %v431, 0
  %v552 = vsel %vm440, %v432, 0
  %v555 = vsel %vm440, %v433, 0
  %557 = vmatprep.subr.mxu0 0.0
  %558 = vmatpush1.xpose.msra.mxu0 %v549
  %559 = vmatprep.subr.mxu0 0.0
  %560 = vmatpush1.xpose.msra.mxu0 %v552
  %561 = vmatprep.subr.mxu0 0.0
  %562 = vmatpush1.xpose.msra.mxu0 %v555
  %563 = vmatprep.subr.mxu0 0.0
  %564 = vmatpush1.xpose.msra.mxu0 0.0
  %565 = vmatprep.subr.mxu0 0.0
  %566 = vmatpush1.xpose.msra.mxu0 0.0
  %567 = vmatprep.subr.mxu0 0.0
  %568 = vmatpush1.xpose.msra.mxu0 0.0
  %569 = vmatprep.subr.mxu0 0.0
  %570 = vmatpush1.xpose.msra.mxu0 0.0
  %571 = vmatprep.subr.mxu0 0.0
  %572 = vmatpush1.xpose.msra.mxu0 0.0
  %573 = vmatprep.subr.mxu0 0.0
  %574 = vmatpush1.xpose.msra.mxu0 0.0
  %575 = vmatprep.subr.mxu0 0.0
  %576 = vmatpush1.xpose.msra.mxu0 0.0
  %577 = vmatprep.subr.mxu0 0.0
  %578 = vmatpush1.xpose.msra.mxu0 0.0
  %579 = vmatprep.subr.mxu0 0.0
  %580 = vmatpush1.xpose.msra.mxu0 0.0
  %581 = vmatprep.subr.mxu0 0.0
  %582 = vmatpush1.xpose.msra.mxu0 0.0
  %583 = vmatprep.subr.mxu0 0.0
  %584 = vmatpush1.xpose.msra.mxu0 0.0
  %585 = vmatprep.subr.mxu0 0.0
  %586 = vmatpush1.xpose.msra.mxu0 0.0
  %587 = vmatprep.subr.mxu0 0.0
  %588 = vmatpush1.xpose.msra.mxu0 0.0
  %589 = vmatprep.subr.mxu0 0.0
  %590 = vmatpush1.xpose.msra.mxu0 0.0
  %591 = vmatprep.subr.mxu0 0.0
  %592 = vmatpush1.xpose.msra.mxu0 0.0
  %593 = vmatprep.subr.mxu0 0.0
  %594 = vmatpush1.xpose.msra.mxu0 0.0
  %595 = vmatprep.subr.mxu0 0.0
  %596 = vmatpush1.xpose.msra.mxu0 0.0
  %597 = vmatprep.subr.mxu0 0.0
  %598 = vmatpush1.xpose.msra.mxu0 0.0
  %599 = vmatprep.subr.mxu0 0.0
  %600 = vmatpush1.xpose.msra.mxu0 0.0
  %601 = vmatprep.subr.mxu0 0.0
  %602 = vmatpush1.xpose.msra.mxu0 0.0
  %603 = vmatprep.subr.mxu0 0.0
  %604 = vmatpush1.xpose.msra.mxu0 0.0
  %605 = vmatprep.subr.mxu0 0.0
  %606 = vmatpush1.xpose.msra.mxu0 0.0
  %607 = vmatprep.subr.mxu0 0.0
  %608 = vmatpush1.xpose.msra.mxu0 0.0
  %609 = vmatprep.subr.mxu0 0.0
  %610 = vmatpush1.xpose.msra.mxu0 0.0
  %611 = vmatprep.subr.mxu0 0.0
  %612 = vmatpush1.xpose.msra.mxu0 0.0
  %613 = vmatprep.subr.mxu0 0.0
  %614 = vmatpush1.xpose.msra.mxu0 0.0
  %615 = vmatprep.subr.mxu0 0.0
  %616 = vmatpush1.xpose.msra.mxu0 0.0
  %617 = vmatprep.subr.mxu0 0.0
  %618 = vmatpush1.xpose.msra.mxu0 0.0
  %619 = vmatprep.subr.mxu0 0.0
  %620 = vmatpush1.xpose.msra.mxu0 0.0
  %621 = vmatprep.mubr.f32.mxu0 0.0
  %622 = vmatmul.mubr.f32.gmra.mrb[0].mxu0 %v540
  %v623 = vpop.f32.mrb[0].mxu0
  %v624 = vadd.f32 0.0, %v623
  %v625 = vpop.f32.mrb[0].mxu0
  %626 = vmatprep.mubr.f32.mxu0 0.0
  %627 = vmatmul.mubr.f32.gmra.mrb[0].mxu0 %v543
  %v628 = vpop.f32.mrb[0].mxu0
  %v629 = vadd.f32 0.0, %v628
  %v630 = vpop.f32.mrb[0].mxu0
  %631 = vmatprep.mubr.f32.mxu0 0.0
  %632 = vmatmul.mubr.f32.gmra.mrb[0].mxu0 %v546
  %v633 = vpop.f32.mrb[0].mxu0
  %v634 = vadd.f32 0.0, %v633
  %v635 = vpop.f32.mrb[0].mxu0
  %636 = vdwg.mxu0
  %v638 = vsel %vm440, %v422, 0
  %v641 = vsel %vm440, %v423, 0
  %v644 = vsel %vm440, %v424, 0
  %v647 = vsel %vm440, %v434, 0
  %v650 = vsel %vm440, %v435, 0
  %v653 = vsel %vm440, %v436, 0
  %655 = vmatprep.subr.mxu0 0.0
  %656 = vmatpush1.xpose.msra.mxu0 %v647
  %657 = vmatprep.subr.mxu0 0.0
  %658 = vmatpush1.xpose.msra.mxu0 %v650
  %659 = vmatprep.subr.mxu0 0.0
  %660 = vmatpush1.xpose.msra.mxu0 %v653
  %661 = vmatprep.subr.mxu0 0.0
  %662 = vmatpush1.xpose.msra.mxu0 0.0
  %663 = vmatprep.subr.mxu0 0.0
  %664 = vmatpush1.xpose.msra.mxu0 0.0
  %665 = vmatprep.subr.mxu0 0.0
  %666 = vmatpush1.xpose.msra.mxu0 0.0
  %667 = vmatprep.subr.mxu0 0.0
  %668 = vmatpush1.xpose.msra.mxu0 0.0
  %669 = vmatprep.subr.mxu0 0.0
  %670 = vmatpush1.xpose.msra.mxu0 0.0
  %671 = vmatprep.subr.mxu0 0.0
  %672 = vmatpush1.xpose.msra.mxu0 0.0
  %673 = vmatprep.subr.mxu0 0.0
  %674 = vmatpush1.xpose.msra.mxu0 0.0
  %675 = vmatprep.subr.mxu0 0.0
  %676 = vmatpush1.xpose.msra.mxu0 0.0
  %677 = vmatprep.subr.mxu0 0.0
  %678 = vmatpush1.xpose.msra.mxu0 0.0
  %679 = vmatprep.subr.mxu0 0.0
  %680 = vmatpush1.xpose.msra.mxu0 0.0
  %681 = vmatprep.subr.mxu0 0.0
  %682 = vmatpush1.xpose.msra.mxu0 0.0
  %683 = vmatprep.subr.mxu0 0.0
  %684 = vmatpush1.xpose.msra.mxu0 0.0
  %685 = vmatprep.subr.mxu0 0.0
  %686 = vmatpush1.xpose.msra.mxu0 0.0
  %687 = vmatprep.subr.mxu0 0.0
  %688 = vmatpush1.xpose.msra.mxu0 0.0
  %689 = vmatprep.subr.mxu0 0.0
  %690 = vmatpush1.xpose.msra.mxu0 0.0
  %691 = vmatprep.subr.mxu0 0.0
  %692 = vmatpush1.xpose.msra.mxu0 0.0
  %693 = vmatprep.subr.mxu0 0.0
  %694 = vmatpush1.xpose.msra.mxu0 0.0
  %695 = vmatprep.subr.mxu0 0.0
  %696 = vmatpush1.xpose.msra.mxu0 0.0
  %697 = vmatprep.subr.mxu0 0.0
  %698 = vmatpush1.xpose.msra.mxu0 0.0
  %699 = vmatprep.subr.mxu0 0.0
  %700 = vmatpush1.xpose.msra.mxu0 0.0
  %701 = vmatprep.subr.mxu0 0.0
  %702 = vmatpush1.xpose.msra.mxu0 0.0
  %703 = vmatprep.subr.mxu0 0.0
  %704 = vmatpush1.xpose.msra.mxu0 0.0
  %705 = vmatprep.subr.mxu0 0.0
  %706 = vmatpush1.xpose.msra.mxu0 0.0
  %707 = vmatprep.subr.mxu0 0.0
  %708 = vmatpush1.xpose.msra.mxu0 0.0
  %709 = vmatprep.subr.mxu0 0.0
  %710 = vmatpush1.xpose.msra.mxu0 0.0
  %711 = vmatprep.subr.mxu0 0.0
  %712 = vmatpush1.xpose.msra.mxu0 0.0
  %713 = vmatprep.subr.mxu0 0.0
  %714 = vmatpush1.xpose.msra.mxu0 0.0
  %715 = vmatprep.subr.mxu0 0.0
  %716 = vmatpush1.xpose.msra.mxu0 0.0
  %717 = vmatprep.subr.mxu0 0.0
  %718 = vmatpush1.xpose.msra.mxu0 0.0
  %719 = vmatprep.mubr.f32.mxu0 0.0
  %720 = vmatmul.mubr.f32.gmra.mrb[0].mxu0 %v638
  %v721 = vpop.f32.mrb[0].mxu0
  %v722 = vadd.f32 0.0, %v721
  %v723 = vpop.f32.mrb[0].mxu0
  %724 = vmatprep.mubr.f32.mxu0 0.0
  %725 = vmatmul.mubr.f32.gmra.mrb[0].mxu0 %v641
  %v726 = vpop.f32.mrb[0].mxu0
  %v727 = vadd.f32 0.0, %v726
  %v728 = vpop.f32.mrb[0].mxu0
  %729 = vmatprep.mubr.f32.mxu0 0.0
  %730 = vmatmul.mubr.f32.gmra.mrb[0].mxu0 %v644
  %v731 = vpop.f32.mrb[0].mxu0
  %v732 = vadd.f32 0.0, %v731
  %v733 = vpop.f32.mrb[0].mxu0
  %734 = vdwg.mxu0
  %v736 = vsel %vm440, %v425, 0
  %v739 = vsel %vm440, %v426, 0
  %v742 = vsel %vm440, %v427, 0
  %v745 = vsel %vm440, %v437, 0
  %v748 = vsel %vm440, %v438, 0
  %v751 = vsel %vm440, %v439, 0
  %753 = vmatprep.subr.mxu0 0.0
  %754 = vmatpush1.xpose.msra.mxu0 %v745
  %755 = vmatprep.subr.mxu0 0.0
  %756 = vmatpush1.xpose.msra.mxu0 %v748
  %757 = vmatprep.subr.mxu0 0.0
  %758 = vmatpush1.xpose.msra.mxu0 %v751
  %759 = vmatprep.subr.mxu0 0.0
  %760 = vmatpush1.xpose.msra.mxu0 0.0
  %761 = vmatprep.subr.mxu0 0.0
  %762 = vmatpush1.xpose.msra.mxu0 0.0
  %763 = vmatprep.subr.mxu0 0.0
  %764 = vmatpush1.xpose.msra.mxu0 0.0
  %765 = vmatprep.subr.mxu0 0.0
  %766 = vmatpush1.xpose.msra.mxu0 0.0
  %767 = vmatprep.subr.mxu0 0.0
  %768 = vmatpush1.xpose.msra.mxu0 0.0
  %769 = vmatprep.subr.mxu0 0.0
  %770 = vmatpush1.xpose.msra.mxu0 0.0
  %771 = vmatprep.subr.mxu0 0.0
  %772 = vmatpush1.xpose.msra.mxu0 0.0
  %773 = vmatprep.subr.mxu0 0.0
  %774 = vmatpush1.xpose.msra.mxu0 0.0
  %775 = vmatprep.subr.mxu0 0.0
  %776 = vmatpush1.xpose.msra.mxu0 0.0
  %777 = vmatprep.subr.mxu0 0.0
  %778 = vmatpush1.xpose.msra.mxu0 0.0
  %779 = vmatprep.subr.mxu0 0.0
  %780 = vmatpush1.xpose.msra.mxu0 0.0
  %781 = vmatprep.subr.mxu0 0.0
  %782 = vmatpush1.xpose.msra.mxu0 0.0
  %783 = vmatprep.subr.mxu0 0.0
  %784 = vmatpush1.xpose.msra.mxu0 0.0
  %785 = vmatprep.subr.mxu0 0.0
  %786 = vmatpush1.xpose.msra.mxu0 0.0
  %787 = vmatprep.subr.mxu0 0.0
  %788 = vmatpush1.xpose.msra.mxu0 0.0
  %789 = vmatprep.subr.mxu0 0.0
  %790 = vmatpush1.xpose.msra.mxu0 0.0
  %791 = vmatprep.subr.mxu0 0.0
  %792 = vmatpush1.xpose.msra.mxu0 0.0
  %793 = vmatprep.subr.mxu0 0.0
  %794 = vmatpush1.xpose.msra.mxu0 0.0
  %795 = vmatprep.subr.mxu0 0.0
  %796 = vmatpush1.xpose.msra.mxu0 0.0
  %797 = vmatprep.subr.mxu0 0.0
  %798 = vmatpush1.xpose.msra.mxu0 0.0
  %799 = vmatprep.subr.mxu0 0.0
  %800 = vmatpush1.xpose.msra.mxu0 0.0
  %801 = vmatprep.subr.mxu0 0.0
  %802 = vmatpush1.xpose.msra.mxu0 0.0
  %803 = vmatprep.subr.mxu0 0.0
  %804 = vmatpush1.xpose.msra.mxu0 0.0
  %805 = vmatprep.subr.mxu0 0.0
  %806 = vmatpush1.xpose.msra.mxu0 0.0
  %807 = vmatprep.subr.mxu0 0.0
  %808 = vmatpush1.xpose.msra.mxu0 0.0
  %809 = vmatprep.subr.mxu0 0.0
  %810 = vmatpush1.xpose.msra.mxu0 0.0
  %811 = vmatprep.subr.mxu0 0.0
  %812 = vmatpush1.xpose.msra.mxu0 0.0
  %813 = vmatprep.subr.mxu0 0.0
  %814 = vmatpush1.xpose.msra.mxu0 0.0
  %815 = vmatprep.subr.mxu0 0.0
  %816 = vmatpush1.xpose.msra.mxu0 0.0
  %817 = vmatprep.mubr.f32.mxu0 0.0
  %818 = vmatmul.mubr.f32.gmra.mrb[0].mxu0 %v736
  %v819 = vpop.f32.mrb[0].mxu0
  %v820 = vadd.f32 0.0, %v819
  %v821 = vpop.f32.mrb[0].mxu0
  %822 = vmatprep.mubr.f32.mxu0 0.0
  %823 = vmatmul.mubr.f32.gmra.mrb[0].mxu0 %v739
  %v824 = vpop.f32.mrb[0].mxu0
  %v825 = vadd.f32 0.0, %v824
  %v826 = vpop.f32.mrb[0].mxu0
  %827 = vmatprep.mubr.f32.mxu0 0.0
  %828 = vmatmul.mubr.f32.gmra.mrb[0].mxu0 %v742
  %v829 = vpop.f32.mrb[0].mxu0
  %v830 = vadd.f32 0.0, %v829
  %v831 = vpop.f32.mrb[0].mxu0
  %832 = vdwg.mxu0
  %v833 = vlaneseq
  %v834 = vshrl.u32 %v833, 7
  %v835 = vadd.s32 %v834, 8
  %v836 = vadd.s32 %v834, 16
  %v837 = vlaneseq
  %v838 = vand.u32 %v837, 127
  %vm839 = vcmp.eq.s32.totalorder %v834, %v838
  %vm840 = vcmp.eq.s32.totalorder %v835, %v838
  %vm841 = vcmp.eq.s32.totalorder %v836, %v838
  %vm842 = vcmp.lt.s32.totalorder %v834, 23
  %vm843 = vcmp.lt.s32.totalorder %v835, 23
  %vm844 = vcmp.lt.s32.totalorder %v836, 23
  %vm845 = vmand %vm839, %vm842
  %vm846 = vmand %vm840, %vm843
  %vm847 = vmand %vm841, %vm844
  %v848 = vsel %vm845, -inf, %v526
  %v849 = vsel %vm846, -inf, %v531
  %v850 = vsel %vm847, -inf, %v536
  %v851 = vsel %vm845, -inf, %v624
  %v852 = vsel %vm846, -inf, %v629
  %v853 = vsel %vm847, -inf, %v634
  %v854 = vsel %vm845, -inf, %v722
  %v855 = vsel %vm846, -inf, %v727
  %v856 = vsel %vm847, -inf, %v732
  %v857 = vsel %vm845, -inf, %v820
  %v858 = vsel %vm846, -inf, %v825
  %v859 = vsel %vm847, -inf, %v830
  %vm860 = vcmask 195584
  %v861 = vsel %vm860, %v848, -inf
  %862 = vmax.xlane.f32.xlu0 %v861
  %v863 = vpop.xlane.xlu0 %862
  %v864 = vsel %vm860, %v849, -inf
  %865 = vmax.xlane.f32.xlu0 %v864
  %v866 = vpop.xlane.xlu0 %865
  %v867 = vsel %vm860, %v850, -inf
  %868 = vmax.xlane.f32.xlu0 %v867
  %v869 = vpop.xlane.xlu0 %868
  %v870 = vsel %vm860, %v851, -inf
  %871 = vmax.xlane.f32.xlu0 %v870
  %v872 = vpop.xlane.xlu0 %871
  %v873 = vsel %vm860, %v852, -inf
  %874 = vmax.xlane.f32.xlu0 %v873
  %v875 = vpop.xlane.xlu0 %874
  %v876 = vsel %vm860, %v853, -inf
  %877 = vmax.xlane.f32.xlu0 %v876
  %v878 = vpop.xlane.xlu0 %877
  %v879 = vsel %vm860, %v854, -inf
  %880 = vmax.xlane.f32.xlu0 %v879
  %v881 = vpop.xlane.xlu0 %880
  %v882 = vsel %vm860, %v855, -inf
  %883 = vmax.xlane.f32.xlu0 %v882
  %v884 = vpop.xlane.xlu0 %883
  %v885 = vsel %vm860, %v856, -inf
  %886 = vmax.xlane.f32.xlu0 %v885
  %v887 = vpop.xlane.xlu0 %886
  %v888 = vsel %vm860, %v857, -inf
  %889 = vmax.xlane.f32.xlu0 %v888
  %v890 = vpop.xlane.xlu0 %889
  %v891 = vsel %vm860, %v858, -inf
  %892 = vmax.xlane.f32.xlu0 %v891
  %v893 = vpop.xlane.xlu0 %892
  %v894 = vsel %vm860, %v859, -inf
  %895 = vmax.xlane.f32.xlu0 %v894
  %v896 = vpop.xlane.xlu0 %895
  %v897 = vsub.f32 %v848, %v863
  %v898 = vsub.f32 %v849, %v866
  %v899 = vsub.f32 %v850, %v869
  %v900 = vsub.f32 %v851, %v872
  %v901 = vsub.f32 %v852, %v875
  %v902 = vsub.f32 %v853, %v878
  %v903 = vsub.f32 %v854, %v881
  %v904 = vsub.f32 %v855, %v884
  %v905 = vsub.f32 %v856, %v887
  %v906 = vsub.f32 %v857, %v890
  %v907 = vsub.f32 %v858, %v893
  %v908 = vsub.f32 %v859, %v896
  %v909 = vmul.f32 %v897, 1.442695
  %v910 = vpow.pop %v909
  %v911 = vmul.f32 %v898, 1.442695
  %v912 = vpow.pop %v911
  %v913 = vmul.f32 %v899, 1.442695
  %v914 = vpow.pop %v913
  %v915 = vmul.f32 %v900, 1.442695
  %v916 = vpow.pop %v915
  %v917 = vmul.f32 %v901, 1.442695
  %v918 = vpow.pop %v917
  %v919 = vmul.f32 %v902, 1.442695
  %v920 = vpow.pop %v919
  %v921 = vmul.f32 %v903, 1.442695
  %v922 = vpow.pop %v921
  %v923 = vmul.f32 %v904, 1.442695
  %v924 = vpow.pop %v923
  %v925 = vmul.f32 %v905, 1.442695
  %v926 = vpow.pop %v925
  %v927 = vmul.f32 %v906, 1.442695
  %v928 = vpow.pop %v927
  %v929 = vmul.f32 %v907, 1.442695
  %v930 = vpow.pop %v929
  %v931 = vmul.f32 %v908, 1.442695
  %v932 = vpow.pop %v931
  %v933 = vsel %vm860, %v910, 0.0
  %934 = vadd.xlane.f32.xlu0 %v933
  %v935 = vpop.xlane.xlu0 %934
  %v936 = vsel %vm860, %v912, 0.0
  %937 = vadd.xlane.f32.xlu0 %v936
  %v938 = vpop.xlane.xlu0 %937
  %v939 = vsel %vm860, %v914, 0.0
  %940 = vadd.xlane.f32.xlu0 %v939
  %v941 = vpop.xlane.xlu0 %940
  %v942 = vsel %vm860, %v916, 0.0
  %943 = vadd.xlane.f32.xlu0 %v942
  %v944 = vpop.xlane.xlu0 %943
  %v945 = vsel %vm860, %v918, 0.0
  %946 = vadd.xlane.f32.xlu0 %v945
  %v947 = vpop.xlane.xlu0 %946
  %v948 = vsel %vm860, %v920, 0.0
  %949 = vadd.xlane.f32.xlu0 %v948
  %v950 = vpop.xlane.xlu0 %949
  %v951 = vsel %vm860, %v922, 0.0
  %952 = vadd.xlane.f32.xlu0 %v951
  %v953 = vpop.xlane.xlu0 %952
  %v954 = vsel %vm860, %v924, 0.0
  %955 = vadd.xlane.f32.xlu0 %v954
  %v956 = vpop.xlane.xlu0 %955
  %v957 = vsel %vm860, %v926, 0.0
  %958 = vadd.xlane.f32.xlu0 %v957
  %v959 = vpop.xlane.xlu0 %958
  %v960 = vsel %vm860, %v928, 0.0
  %961 = vadd.xlane.f32.xlu0 %v960
  %v962 = vpop.xlane.xlu0 %961
  %v963 = vsel %vm860, %v930, 0.0
  %964 = vadd.xlane.f32.xlu0 %v963
  %v965 = vpop.xlane.xlu0 %964
  %v966 = vsel %vm860, %v932, 0.0
  %967 = vadd.xlane.f32.xlu0 %v966
  %v968 = vpop.xlane.xlu0 %967
  %v969 = vrcp.pop %v935
  %v970 = vrcp.pop %v938
  %v971 = vrcp.pop %v941
  %v972 = vrcp.pop %v944
  %v973 = vrcp.pop %v947
  %v974 = vrcp.pop %v950
  %v975 = vrcp.pop %v953
  %v976 = vrcp.pop %v956
  %v977 = vrcp.pop %v959
  %v978 = vrcp.pop %v962
  %v979 = vrcp.pop %v965
  %v980 = vrcp.pop %v968
  %v981 = vmul.f32 %v910, %v969
  %v982 = vmul.f32 %v912, %v970
  %v983 = vmul.f32 %v914, %v971
  %v984 = vmul.f32 %v916, %v972
  %v985 = vmul.f32 %v918, %v973
  %v986 = vmul.f32 %v920, %v974
  %v987 = vmul.f32 %v922, %v975
  %v988 = vmul.f32 %v924, %v976
  %v989 = vmul.f32 %v926, %v977
  %v990 = vmul.f32 %v928, %v978
  %v991 = vmul.f32 %v930, %v979
  %v992 = vmul.f32 %v932, %v980
  %v994 = vsel %vm860, %v981, 0
  %v997 = vsel %vm860, %v982, 0
  %v1000 = vsel %vm860, %v983, 0
  %1002 = vmatprep.subr.mxu0 0.0
  %1003 = vmatpush1.msra.mxu0 %v358
  %1004 = vmatprep.subr.mxu0 0.0
  %1005 = vmatpush1.msra.mxu0 %v363
  %1006 = vmatprep.subr.mxu0 0.0
  %1007 = vmatpush1.msra.mxu0 %v368
  %1008 = vmatprep.subr.mxu0 0.0
  %1009 = vmatpush1.msra.mxu0 0.0
  %1010 = vmatprep.subr.mxu0 0.0
  %1011 = vmatpush1.msra.mxu0 0.0
  %1012 = vmatprep.subr.mxu0 0.0
  %1013 = vmatpush1.msra.mxu0 0.0
  %1014 = vmatprep.subr.mxu0 0.0
  %1015 = vmatpush1.msra.mxu0 0.0
  %1016 = vmatprep.subr.mxu0 0.0
  %1017 = vmatpush1.msra.mxu0 0.0
  %1018 = vmatprep.subr.mxu0 0.0
  %1019 = vmatpush1.msra.mxu0 0.0
  %1020 = vmatprep.subr.mxu0 0.0
  %1021 = vmatpush1.msra.mxu0 0.0
  %1022 = vmatprep.subr.mxu0 0.0
  %1023 = vmatpush1.msra.mxu0 0.0
  %1024 = vmatprep.subr.mxu0 0.0
  %1025 = vmatpush1.msra.mxu0 0.0
  %1026 = vmatprep.subr.mxu0 0.0
  %1027 = vmatpush1.msra.mxu0 0.0
  %1028 = vmatprep.subr.mxu0 0.0
  %1029 = vmatpush1.msra.mxu0 0.0
  %1030 = vmatprep.subr.mxu0 0.0
  %1031 = vmatpush1.msra.mxu0 0.0
  %1032 = vmatprep.subr.mxu0 0.0
  %1033 = vmatpush1.msra.mxu0 0.0
  %1034 = vmatprep.subr.mxu0 0.0
  %1035 = vmatpush1.msra.mxu0 0.0
  %1036 = vmatprep.subr.mxu0 0.0
  %1037 = vmatpush1.msra.mxu0 0.0
  %1038 = vmatprep.subr.mxu0 0.0
  %1039 = vmatpush1.msra.mxu0 0.0
  %1040 = vmatprep.subr.mxu0 0.0
  %1041 = vmatpush1.msra.mxu0 0.0
  %1042 = vmatprep.subr.mxu0 0.0
  %1043 = vmatpush1.msra.mxu0 0.0
  %1044 = vmatprep.subr.mxu0 0.0
  %1045 = vmatpush1.msra.mxu0 0.0
  %1046 = vmatprep.subr.mxu0 0.0
  %1047 = vmatpush1.msra.mxu0 0.0
  %1048 = vmatprep.subr.mxu0 0.0
  %1049 = vmatpush1.msra.mxu0 0.0
  %1050 = vmatprep.subr.mxu0 0.0
  %1051 = vmatpush1.msra.mxu0 0.0
  %1052 = vmatprep.subr.mxu0 0.0
  %1053 = vmatpush1.msra.mxu0 0.0
  %1054 = vmatprep.subr.mxu0 0.0
  %1055 = vmatpush1.msra.mxu0 0.0
  %1056 = vmatprep.subr.mxu0 0.0
  %1057 = vmatpush1.msra.mxu0 0.0
  %1058 = vmatprep.subr.mxu0 0.0
  %1059 = vmatpush1.msra.mxu0 0.0
  %1060 = vmatprep.subr.mxu0 0.0
  %1061 = vmatpush1.msra.mxu0 0.0
  %1062 = vmatprep.subr.mxu0 0.0
  %1063 = vmatpush1.msra.mxu0 0.0
  %1064 = vmatprep.subr.mxu0 0.0
  %1065 = vmatpush1.msra.mxu0 0.0
  %1066 = vmatprep.mubr.f32.mxu0 0.0
  %1067 = vmatmul.mubr.f32.gmra.mrb[0].mxu0 %v994
  %v1068 = vpop.f32.mrb[0].mxu0
  %v1069 = vadd.f32 0.0, %v1068
  %v1070 = vpop.f32.mrb[0].mxu0
  %1071 = vmatprep.mubr.f32.mxu0 0.0
  %1072 = vmatmul.mubr.f32.gmra.mrb[0].mxu0 %v997
  %v1073 = vpop.f32.mrb[0].mxu0
  %v1074 = vadd.f32 0.0, %v1073
  %v1075 = vpop.f32.mrb[0].mxu0
  %1076 = vmatprep.mubr.f32.mxu0 0.0
  %1077 = vmatmul.mubr.f32.gmra.mrb[0].mxu0 %v1000
  %v1078 = vpop.f32.mrb[0].mxu0
  %v1079 = vadd.f32 0.0, %v1078
  %v1080 = vpop.f32.mrb[0].mxu0
  %1081 = vdwg.mxu0
  %v1083 = vsel %vm860, %v984, 0
  %v1086 = vsel %vm860, %v985, 0
  %v1089 = vsel %vm860, %v986, 0
  %1091 = vmatprep.subr.mxu0 0.0
  %1092 = vmatpush1.msra.mxu0 %v373
  %1093 = vmatprep.subr.mxu0 0.0
  %1094 = vmatpush1.msra.mxu0 %v378
  %1095 = vmatprep.subr.mxu0 0.0
  %1096 = vmatpush1.msra.mxu0 %v383
  %1097 = vmatprep.subr.mxu0 0.0
  %1098 = vmatpush1.msra.mxu0 0.0
  %1099 = vmatprep.subr.mxu0 0.0
  %1100 = vmatpush1.msra.mxu0 0.0
  %1101 = vmatprep.subr.mxu0 0.0
  %1102 = vmatpush1.msra.mxu0 0.0
  %1103 = vmatprep.subr.mxu0 0.0
  %1104 = vmatpush1.msra.mxu0 0.0
  %1105 = vmatprep.subr.mxu0 0.0
  %1106 = vmatpush1.msra.mxu0 0.0
  %1107 = vmatprep.subr.mxu0 0.0
  %1108 = vmatpush1.msra.mxu0 0.0
  %1109 = vmatprep.subr.mxu0 0.0
  %1110 = vmatpush1.msra.mxu0 0.0
  %1111 = vmatprep.subr.mxu0 0.0
  %1112 = vmatpush1.msra.mxu0 0.0
  %1113 = vmatprep.subr.mxu0 0.0
  %1114 = vmatpush1.msra.mxu0 0.0
  %1115 = vmatprep.subr.mxu0 0.0
  %1116 = vmatpush1.msra.mxu0 0.0
  %1117 = vmatprep.subr.mxu0 0.0
  %1118 = vmatpush1.msra.mxu0 0.0
  %1119 = vmatprep.subr.mxu0 0.0
  %1120 = vmatpush1.msra.mxu0 0.0
  %1121 = vmatprep.subr.mxu0 0.0
  %1122 = vmatpush1.msra.mxu0 0.0
  %1123 = vmatprep.subr.mxu0 0.0
  %1124 = vmatpush1.msra.mxu0 0.0
  %1125 = vmatprep.subr.mxu0 0.0
  %1126 = vmatpush1.msra.mxu0 0.0
  %1127 = vmatprep.subr.mxu0 0.0
  %1128 = vmatpush1.msra.mxu0 0.0
  %1129 = vmatprep.subr.mxu0 0.0
  %1130 = vmatpush1.msra.mxu0 0.0
  %1131 = vmatprep.subr.mxu0 0.0
  %1132 = vmatpush1.msra.mxu0 0.0
  %1133 = vmatprep.subr.mxu0 0.0
  %1134 = vmatpush1.msra.mxu0 0.0
  %1135 = vmatprep.subr.mxu0 0.0
  %1136 = vmatpush1.msra.mxu0 0.0
  %1137 = vmatprep.subr.mxu0 0.0
  %1138 = vmatpush1.msra.mxu0 0.0
  %1139 = vmatprep.subr.mxu0 0.0
  %1140 = vmatpush1.msra.mxu0 0.0
  %1141 = vmatprep.subr.mxu0 0.0
  %1142 = vmatpush1.msra.mxu0 0.0
  %1143 = vmatprep.subr.mxu0 0.0
  %1144 = vmatpush1.msra.mxu0 0.0
  %1145 = vmatprep.subr.mxu0 0.0
  %1146 = vmatpush1.msra.mxu0 0.0
  %1147 = vmatprep.subr.mxu0 0.0
  %1148 = vmatpush1.msra.mxu0 0.0
  %1149 = vmatprep.subr.mxu0 0.0
  %1150 = vmatpush1.msra.mxu0 0.0
  %1151 = vmatprep.subr.mxu0 0.0
  %1152 = vmatpush1.msra.mxu0 0.0
  %1153 = vmatprep.subr.mxu0 0.0
  %1154 = vmatpush1.msra.mxu0 0.0
  %1155 = vmatprep.mubr.f32.mxu0 0.0
  %1156 = vmatmul.mubr.f32.gmra.mrb[0].mxu0 %v1083
  %v1157 = vpop.f32.mrb[0].mxu0
  %v1158 = vadd.f32 0.0, %v1157
  %v1159 = vpop.f32.mrb[0].mxu0
  %1160 = vmatprep.mubr.f32.mxu0 0.0
  %1161 = vmatmul.mubr.f32.gmra.mrb[0].mxu0 %v1086
  %v1162 = vpop.f32.mrb[0].mxu0
  %v1163 = vadd.f32 0.0, %v1162
  %v1164 = vpop.f32.mrb[0].mxu0
  %1165 = vmatprep.mubr.f32.mxu0 0.0
  %1166 = vmatmul.mubr.f32.gmra.mrb[0].mxu0 %v1089
  %v1167 = vpop.f32.mrb[0].mxu0
  %v1168 = vadd.f32 0.0, %v1167
  %v1169 = vpop.f32.mrb[0].mxu0
  %1170 = vdwg.mxu0
  %v1172 = vsel %vm860, %v987, 0
  %v1175 = vsel %vm860, %v988, 0
  %v1178 = vsel %vm860, %v989, 0
  %1180 = vmatprep.subr.mxu0 0.0
  %1181 = vmatpush1.msra.mxu0 %v388
  %1182 = vmatprep.subr.mxu0 0.0
  %1183 = vmatpush1.msra.mxu0 %v393
  %1184 = vmatprep.subr.mxu0 0.0
  %1185 = vmatpush1.msra.mxu0 %v398
  %1186 = vmatprep.subr.mxu0 0.0
  %1187 = vmatpush1.msra.mxu0 0.0
  %1188 = vmatprep.subr.mxu0 0.0
  %1189 = vmatpush1.msra.mxu0 0.0
  %1190 = vmatprep.subr.mxu0 0.0
  %1191 = vmatpush1.msra.mxu0 0.0
  %1192 = vmatprep.subr.mxu0 0.0
  %1193 = vmatpush1.msra.mxu0 0.0
  %1194 = vmatprep.subr.mxu0 0.0
  %1195 = vmatpush1.msra.mxu0 0.0
  %1196 = vmatprep.subr.mxu0 0.0
  %1197 = vmatpush1.msra.mxu0 0.0
  %1198 = vmatprep.subr.mxu0 0.0
  %1199 = vmatpush1.msra.mxu0 0.0
  %1200 = vmatprep.subr.mxu0 0.0
  %1201 = vmatpush1.msra.mxu0 0.0
  %1202 = vmatprep.subr.mxu0 0.0
  %1203 = vmatpush1.msra.mxu0 0.0
  %1204 = vmatprep.subr.mxu0 0.0
  %1205 = vmatpush1.msra.mxu0 0.0
  %1206 = vmatprep.subr.mxu0 0.0
  %1207 = vmatpush1.msra.mxu0 0.0
  %1208 = vmatprep.subr.mxu0 0.0
  %1209 = vmatpush1.msra.mxu0 0.0
  %1210 = vmatprep.subr.mxu0 0.0
  %1211 = vmatpush1.msra.mxu0 0.0
  %1212 = vmatprep.subr.mxu0 0.0
  %1213 = vmatpush1.msra.mxu0 0.0
  %1214 = vmatprep.subr.mxu0 0.0
  %1215 = vmatpush1.msra.mxu0 0.0
  %1216 = vmatprep.subr.mxu0 0.0
  %1217 = vmatpush1.msra.mxu0 0.0
  %1218 = vmatprep.subr.mxu0 0.0
  %1219 = vmatpush1.msra.mxu0 0.0
  %1220 = vmatprep.subr.mxu0 0.0
  %1221 = vmatpush1.msra.mxu0 0.0
  %1222 = vmatprep.subr.mxu0 0.0
  %1223 = vmatpush1.msra.mxu0 0.0
  %1224 = vmatprep.subr.mxu0 0.0
  %1225 = vmatpush1.msra.mxu0 0.0
  %1226 = vmatprep.subr.mxu0 0.0
  %1227 = vmatpush1.msra.mxu0 0.0
  %1228 = vmatprep.subr.mxu0 0.0
  %1229 = vmatpush1.msra.mxu0 0.0
  %1230 = vmatprep.subr.mxu0 0.0
  %1231 = vmatpush1.msra.mxu0 0.0
  %1232 = vmatprep.subr.mxu0 0.0
  %1233 = vmatpush1.msra.mxu0 0.0
  %1234 = vmatprep.subr.mxu0 0.0
  %1235 = vmatpush1.msra.mxu0 0.0
  %1236 = vmatprep.subr.mxu0 0.0
  %1237 = vmatpush1.msra.mxu0 0.0
  %1238 = vmatprep.subr.mxu0 0.0
  %1239 = vmatpush1.msra.mxu0 0.0
  %1240 = vmatprep.subr.mxu0 0.0
  %1241 = vmatpush1.msra.mxu0 0.0
  %1242 = vmatprep.subr.mxu0 0.0
  %1243 = vmatpush1.msra.mxu0 0.0
  %1244 = vmatprep.mubr.f32.mxu0 0.0
  %1245 = vmatmul.mubr.f32.gmra.mrb[0].mxu0 %v1172
  %v1246 = vpop.f32.mrb[0].mxu0
  %v1247 = vadd.f32 0.0, %v1246
  %v1248 = vpop.f32.mrb[0].mxu0
  %1249 = vmatprep.mubr.f32.mxu0 0.0
  %1250 = vmatmul.mubr.f32.gmra.mrb[0].mxu0 %v1175
  %v1251 = vpop.f32.mrb[0].mxu0
  %v1252 = vadd.f32 0.0, %v1251
  %v1253 = vpop.f32.mrb[0].mxu0
  %1254 = vmatprep.mubr.f32.mxu0 0.0
  %1255 = vmatmul.mubr.f32.gmra.mrb[0].mxu0 %v1178
  %v1256 = vpop.f32.mrb[0].mxu0
  %v1257 = vadd.f32 0.0, %v1256
  %v1258 = vpop.f32.mrb[0].mxu0
  %1259 = vdwg.mxu0
  %v1261 = vsel %vm860, %v990, 0
  %v1264 = vsel %vm860, %v991, 0
  %v1267 = vsel %vm860, %v992, 0
  %1269 = vmatprep.subr.mxu0 0.0
  %1270 = vmatpush1.msra.mxu0 %v403
  %1271 = vmatprep.subr.mxu0 0.0
  %1272 = vmatpush1.msra.mxu0 %v408
  %1273 = vmatprep.subr.mxu0 0.0
  %1274 = vmatpush1.msra.mxu0 %v413
  %1275 = vmatprep.subr.mxu0 0.0
  %1276 = vmatpush1.msra.mxu0 0.0
  %1277 = vmatprep.subr.mxu0 0.0
  %1278 = vmatpush1.msra.mxu0 0.0
  %1279 = vmatprep.subr.mxu0 0.0
  %1280 = vmatpush1.msra.mxu0 0.0
  %1281 = vmatprep.subr.mxu0 0.0
  %1282 = vmatpush1.msra.mxu0 0.0
  %1283 = vmatprep.subr.mxu0 0.0
  %1284 = vmatpush1.msra.mxu0 0.0
  %1285 = vmatprep.subr.mxu0 0.0
  %1286 = vmatpush1.msra.mxu0 0.0
  %1287 = vmatprep.subr.mxu0 0.0
  %1288 = vmatpush1.msra.mxu0 0.0
  %1289 = vmatprep.subr.mxu0 0.0
  %1290 = vmatpush1.msra.mxu0 0.0
  %1291 = vmatprep.subr.mxu0 0.0
  %1292 = vmatpush1.msra.mxu0 0.0
  %1293 = vmatprep.subr.mxu0 0.0
  %1294 = vmatpush1.msra.mxu0 0.0
  %1295 = vmatprep.subr.mxu0 0.0
  %1296 = vmatpush1.msra.mxu0 0.0
  %1297 = vmatprep.subr.mxu0 0.0
  %1298 = vmatpush1.msra.mxu0 0.0
  %1299 = vmatprep.subr.mxu0 0.0
  %1300 = vmatpush1.msra.mxu0 0.0
  %1301 = vmatprep.subr.mxu0 0.0
  %1302 = vmatpush1.msra.mxu0 0.0
  %1303 = vmatprep.subr.mxu0 0.0
  %1304 = vmatpush1.msra.mxu0 0.0
  %1305 = vmatprep.subr.mxu0 0.0
  %1306 = vmatpush1.msra.mxu0 0.0
  %1307 = vmatprep.subr.mxu0 0.0
  %1308 = vmatpush1.msra.mxu0 0.0
  %1309 = vmatprep.subr.mxu0 0.0
  %1310 = vmatpush1.msra.mxu0 0.0
  %1311 = vmatprep.subr.mxu0 0.0
  %1312 = vmatpush1.msra.mxu0 0.0
  %1313 = vmatprep.subr.mxu0 0.0
  %1314 = vmatpush1.msra.mxu0 0.0
  %1315 = vmatprep.subr.mxu0 0.0
  %1316 = vmatpush1.msra.mxu0 0.0
  %1317 = vmatprep.subr.mxu0 0.0
  %1318 = vmatpush1.msra.mxu0 0.0
  %1319 = vmatprep.subr.mxu0 0.0
  %1320 = vmatpush1.msra.mxu0 0.0
  %1321 = vmatprep.subr.mxu0 0.0
  %1322 = vmatpush1.msra.mxu0 0.0
  %1323 = vmatprep.subr.mxu0 0.0
  %1324 = vmatpush1.msra.mxu0 0.0
  %1325 = vmatprep.subr.mxu0 0.0
  %1326 = vmatpush1.msra.mxu0 0.0
  %1327 = vmatprep.subr.mxu0 0.0
  %1328 = vmatpush1.msra.mxu0 0.0
  %1329 = vmatprep.subr.mxu0 0.0
  %1330 = vmatpush1.msra.mxu0 0.0
  %1331 = vmatprep.subr.mxu0 0.0
  %1332 = vmatpush1.msra.mxu0 0.0
  %1333 = vmatprep.mubr.f32.mxu0 0.0
  %1334 = vmatmul.mubr.f32.gmra.mrb[0].mxu0 %v1261
  %v1335 = vpop.f32.mrb[0].mxu0
  %v1336 = vadd.f32 0.0, %v1335
  %v1337 = vpop.f32.mrb[0].mxu0
  %1338 = vmatprep.mubr.f32.mxu0 0.0
  %1339 = vmatmul.mubr.f32.gmra.mrb[0].mxu0 %v1264
  %v1340 = vpop.f32.mrb[0].mxu0
  %v1341 = vadd.f32 0.0, %v1340
  %v1342 = vpop.f32.mrb[0].mxu0
  %1343 = vmatprep.mubr.f32.mxu0 0.0
  %1344 = vmatmul.mubr.f32.gmra.mrb[0].mxu0 %v1267
  %v1345 = vpop.f32.mrb[0].mxu0
  %v1346 = vadd.f32 0.0, %v1345
  %v1347 = vpop.f32.mrb[0].mxu0
  %1348 = vdwg.mxu0
  %1349 = vst.msk [vmem:[%s3] sm:$0xff] %vm440, %v1069
  %1350 = vst.msk [vmem:[%s3 + $0x8] sm:$0xff] %vm440, %v1074
  %1351 = vst.msk [vmem:[%s3 + $0x10] sm:$0xff] %vm440, %v1079
  %1352 = vst.msk [vmem:[%s3 + $0x18] sm:$0xff] %vm440, %v1158
  %1353 = vst.msk [vmem:[%s3 + $0x20] sm:$0xff] %vm440, %v1163
  %1354 = vst.msk [vmem:[%s3 + $0x28] sm:$0xff] %vm440, %v1168
  %1355 = vst.msk [vmem:[%s3 + $0x30] sm:$0xff] %vm440, %v1247
  %1356 = vst.msk [vmem:[%s3 + $0x38] sm:$0xff] %vm440, %v1252
  %1357 = vst.msk [vmem:[%s3 + $0x40] sm:$0xff] %vm440, %v1257
  %1358 = vst.msk [vmem:[%s3 + $0x48] sm:$0xff] %vm440, %v1336
  %1359 = vst.msk [vmem:[%s3 + $0x50] sm:$0xff] %vm440, %v1341
  %1360 = vst.msk [vmem:[%s3 + $0x58] sm:$0xff] %vm440, %v1346
  // Predicated region
  $region14: #{tpu_custom_call.1} parent=0 // pred_check
    _
  $region15: #{tpu_custom_call.1} parent=0 // pred_check_branch
    %1362 = sbr.rel (0) target = $region17
  $region16: #{tpu_custom_call.1} parent=0 // pred_region
    _
  $region17: #{tpu_custom_call.1} parent=0 // pred_fallthru
    _
  // Predicated region
  $region18: #{tpu_custom_call.1} parent=0 // pred_check
    _
  $region19: #{tpu_custom_call.1} parent=0 // pred_check_branch
    %1364 = sbr.rel (0) target = $region21
  $region20: #{tpu_custom_call.1} parent=0 // pred_region
    _
  $region21: #{tpu_custom_call.1} parent=0 // pred_fallthru
    _

</llo_original>
